<compile_context>
chip_gen: v5e
topology: v5e:2x2
jax: 0.10.0
libtpu: 0.0.40
codegen_flags: <defaults>
</compile_context>

<pallas_src>
import jax
import jax.numpy as jnp
from jax import lax
from jax.experimental import pallas as pl
from jax.experimental.pallas import tpu as pltpu


def _round_up(x: int, m: int) -> int:
    return ((x + m - 1) // m) * m


def _ceil_div(a: int, b: int) -> int:
    return -(-a // b)


def vit_head_kernel(x_ref, w_ref, b_ref, o_ref):
    # x_ref : (TM, K)   CLS-token rows for this M tile
    # w_ref : (TN, K)   classifier weight rows (PyTorch [num_classes, F] layout)
    # b_ref : (1, TN)   classifier bias slice
    # o_ref : (TM, TN)  logits tile
    acc = lax.dot_general(
        x_ref[...], w_ref[...],
        dimension_numbers=(((1,), (1,)), ((), ())),     # cls @ W^T on the MXU
        preferred_element_type=jnp.float32)
    o_ref[...] = (acc + b_ref[...]).astype(o_ref.dtype)


def vision_transformer_head(x, weight, bias, *, stream_dtype=None):
    """Forward pass of VisionTransformerHead.

    x      : [B, S, F]          token sequence (CLS token at position 0)
    weight : [num_classes, F]   nn.Linear weight (PyTorch layout, NOT transposed)
    bias   : [num_classes]
    stream_dtype : optional dtype (e.g. jnp.bfloat16) to stream x/weight in;
                   accumulation stays float32.  None = keep input dtypes.
    returns: [B, num_classes]
    """
    B, S, F = x.shape
    num_classes = weight.shape[0]
    out_dtype = x.dtype

    if stream_dtype is not None:
        x = x.astype(stream_dtype)
        weight = weight.astype(stream_dtype)

    x_itemsize = jnp.dtype(x.dtype).itemsize
    w_itemsize = jnp.dtype(weight.dtype).itemsize
    b_itemsize = jnp.dtype(bias.dtype).itemsize
    o_itemsize = jnp.dtype(out_dtype).itemsize

    K_pad = _round_up(F, 128)

    # ---- tile sizes: minimum tile count, minimal padding, VMEM-bounded ------
    budget = 8 * 1024 * 1024                                  # per-stream, per-buffer
    max_tm = min(512, max(8, (budget // (K_pad * x_itemsize)) // 8 * 8))
    max_tn = min(512, max(128, (budget // (K_pad * w_itemsize)) // 128 * 128))

    n_m = _ceil_div(B, max_tm)                                # minimum #row tiles
    TM = _round_up(_ceil_div(B, n_m), 8)                      # evenly distributed
    M_pad = TM * n_m

    N128 = _round_up(num_classes, 128)
    n_n = _ceil_div(N128, max_tn)                             # minimum #col tiles
    TN = _round_up(_ceil_div(N128, n_n), 128)
    N_pad = TN * n_n

    # ---- operands ------------------------------------------------------------
    # CLS rows: read directly out of x (zero-copy) when layout allows it.
    if F == K_pad and M_pad == B:
        x_op = x.reshape(B, S * F)        # free reshape; block col 0 == CLS token
    else:
        cls = x[:, 0, :]
        x_op = jnp.pad(cls, ((0, M_pad - B), (0, K_pad - F)))

    # Weight stays in [num_classes, F] layout; pad only when required.
    if weight.shape == (N_pad, K_pad):
        w_op = weight
    else:
        w_op = jnp.pad(weight, ((0, N_pad - num_classes), (0, K_pad - F)))
    b_op = jnp.pad(bias.reshape(1, -1), ((0, 0), (0, N_pad - num_classes)))

    grid = (n_m, n_n)
    cost = pl.CostEstimate(
        flops=2 * M_pad * K_pad * N_pad,
        transcendentals=0,
        bytes_accessed=(M_pad * K_pad * x_itemsize          # CLS rows (once)
                        + n_m * N_pad * K_pad * w_itemsize  # weight, re-streamed per M tile
                        + N_pad * b_itemsize
                        + M_pad * N_pad * o_itemsize),
    )

    out_padded = pl.pallas_call(
        vit_head_kernel,
        out_shape=jax.ShapeDtypeStruct((M_pad, N_pad), out_dtype),
        grid_spec=pltpu.PrefetchScalarGridSpec(
            num_scalar_prefetch=0,
            grid=grid,
            in_specs=[
                pl.BlockSpec((TM, K_pad), lambda i, j: (i, 0)),   # CLS rows (resident over j)
                pl.BlockSpec((TN, K_pad), lambda i, j: (j, 0)),   # weight column tile
                pl.BlockSpec((1, TN), lambda i, j: (0, j)),       # bias slice
            ],
            out_specs=pl.BlockSpec((TM, TN), lambda i, j: (i, j)),
        ),
        compiler_params=pltpu.CompilerParams(
            dimension_semantics=("parallel", "parallel")),
        cost_estimate=cost,
    )(x_op, w_op, b_op)

    # slice away alignment padding
    return out_padded[:B, :num_classes]


if __name__ == "__main__":
    def reference(x, w, b):
        return x[:, 0, :] @ w.T + b

    key = jax.random.PRNGKey(0)

    # Case 1: tiny, unaligned shapes (exercises the padded fallback path).
    B, S, F, N = 2, 8, 32, 10
    k1, k2, k3, key = jax.random.split(key, 4)
    x = jax.random.normal(k1, (B, S, F), dtype=jnp.float32)
    w = jax.random.normal(k2, (N, F), dtype=jnp.float32) * 0.02
    b = jax.random.normal(k3, (N,), dtype=jnp.float32) * 0.02
    out1 = jax.block_until_ready(vision_transformer_head(x, w, b))
    assert out1.shape == (B, N)
    assert jnp.allclose(out1, reference(x, w, b), atol=1e-3, rtol=1e-3)

    # Case 2: 128-aligned features / 8-aligned batch (exercises the zero-copy
    # CLS read path that real ViT dims hit).
    B, S, F, N = 8, 4, 128, 16
    k1, k2, k3, key = jax.random.split(key, 4)
    x = jax.random.normal(k1, (B, S, F), dtype=jnp.float32)
    w = jax.random.normal(k2, (N, F), dtype=jnp.float32) * 0.02
    b = jax.random.normal(k3, (N,), dtype=jnp.float32) * 0.02
    out2 = jax.block_until_ready(vision_transformer_head(x, w, b))
    assert out2.shape == (B, N)
    assert jnp.allclose(out2, reference(x, w, b), atol=1e-3, rtol=1e-3)

    print("KERNEL_OK")
</pallas_src>

<mosaic_0001>
module attributes {stable_mosaic.version = 11 : i64} {
  func.func @vit_head_kernel(%arg0: i32, %arg1: i32, %arg2: memref<8x128xf32, #tpu.memory_space<vmem>>, %arg3: memref<128x128xf32, #tpu.memory_space<vmem>>, %arg4: memref<1x128xf32, #tpu.memory_space<vmem>>, %arg5: memref<8x128xf32, #tpu.memory_space<vmem>>) attributes {dimension_semantics = [#tpu.dimension_semantics<parallel>, #tpu.dimension_semantics<parallel>], iteration_bounds = array<i64: 1, 1>, scalar_prefetch = 0 : i64, scratch_operands = 0 : i64, tpu.core_type = #tpu.core_type<tc>, window_params = [{transform_indices = @transform_0, window_bounds = array<i64: 8, 128>}, {transform_indices = @transform_1, window_bounds = array<i64: 128, 128>}, {transform_indices = @transform_2, window_bounds = array<i64: 1, 128>}, {transform_indices = @transform_3, window_bounds = array<i64: 8, 128>}]} {
    %c0 = arith.constant 0 : index
    %c0_0 = arith.constant 0 : index
    %0 = vector.load %arg2[%c0, %c0_0] : memref<8x128xf32, #tpu.memory_space<vmem>>, vector<8x128xf32>
    %c0_1 = arith.constant 0 : index
    %c0_2 = arith.constant 0 : index
    %1 = vector.load %arg3[%c0_1, %c0_2] : memref<128x128xf32, #tpu.memory_space<vmem>>, vector<128x128xf32>
    %cst = arith.constant dense<0.000000e+00> : vector<8x128xf32>
    %2 = tpu.matmul %0, %1, %cst {dimension_numbers = #tpu.dot_dimension_numbers<[1], [1], [0], [0], [0, 0, 1, 0], [], []>} : vector<8x128xf32>, vector<128x128xf32>, vector<8x128xf32> -> vector<8x128xf32>
    %c0_3 = arith.constant 0 : index
    %c0_4 = arith.constant 0 : index
    %3 = vector.load %arg4[%c0_3, %c0_4] : memref<1x128xf32, #tpu.memory_space<vmem>>, vector<1x128xf32>
    %4 = vector.broadcast %3 : vector<1x128xf32> to vector<8x128xf32>
    %5 = arith.addf %2, %4 : vector<8x128xf32>
    %c0_5 = arith.constant 0 : index
    %c0_6 = arith.constant 0 : index
    %6 = vector.load %arg5[%c0_5, %c0_6] : memref<8x128xf32, #tpu.memory_space<vmem>>, vector<8x128xf32>
    tpu.vector_store %arg5[%c0_5, %c0_6], %5 {strides = array<i32>} : memref<8x128xf32, #tpu.memory_space<vmem>>, vector<8x128xf32>,
    return
  }
  func.func @transform_0(%arg0: i32, %arg1: i32) -> (i32, i32) {
    %c0_i32 = arith.constant 0 : i32
    %c0_i32_0 = arith.constant 0 : i32
    return %arg0, %c0_i32 : i32, i32
  }
  func.func @transform_1(%arg0: i32, %arg1: i32) -> (i32, i32) {
    %c0_i32 = arith.constant 0 : i32
    %c0_i32_0 = arith.constant 0 : i32
    return %arg1, %c0_i32 : i32, i32
  }
  func.func @transform_2(%arg0: i32, %arg1: i32) -> (i32, i32) {
    %c0_i32 = arith.constant 0 : i32
    %c0_i32_0 = arith.constant 0 : i32
    return %c0_i32, %arg1 : i32, i32
  }
  func.func @transform_3(%arg0: i32, %arg1: i32) -> (i32, i32) {
    %c0_i32 = arith.constant 0 : i32
    return %arg0, %arg1 : i32, i32
  }
}

</mosaic_0001>

<llo_original>
// kernel: tpu_custom_call.1
$region0: #{tpu_custom_call.1}
  #allocation0 [shape = 'u32[]', space=smem, size = 0x4, offset = 0x4, fixed_abs, tag = 'smem constant byte address 0x4 - core index']
  #allocation1 [shape = 'u32[72,128]{1,0:T(1,128)}', space=vmem, size = 0x9000, scoped, tag = 'internal scratch']
  %s0 = inlined_call_operand.hbm [shape: f32[8,128], index: 0, kind: input, shape index: {}]
  %s1 = inlined_call_operand.hbm [shape: f32[128,128], index: 1, kind: input, shape index: {}]
  %s2 = inlined_call_operand.vmem [shape: f32[1,128], index: 2, kind: input, shape index: {}]
  %s3 = inlined_call_operand.hbm [shape: f32[8,128], index: 3, kind: output, shape index: {}]
  %s4 = sld [smem:[#allocation0]]
  $region30: #{tpu_custom_call.1} parent=0
    _
  %s6 = ssub.s32 1, %s4
  %s7 = scalar_select 0, %s6, %s4
  $region1: #{tpu_custom_call.1} parent=0
    #allocation2 [shape = 'u8[4096]{0}', space=vmem, size = 0x1000, scoped, tag = 'input window, operand 0, single buffered']
    #allocation3 [shape = 's32[1]{0}', space=sflag, size = 0x4, scoped, tag = 'scoped memory for tpu_custom_call.1']
    #allocation4 [shape = 's32[1]{0}', space=sflag, size = 0x4, scoped, tag = 'scoped memory for tpu_custom_call.1']
    #allocation5 [shape = 'u8[65536]{0}', space=vmem, size = 0x10000, scoped, tag = 'input window, operand 1, single buffered']
    #allocation6 [shape = 's32[1]{0}', space=sflag, size = 0x4, scoped, tag = 'scoped memory for tpu_custom_call.1']
    #allocation7 [shape = 'u8[4096]{0}', space=vmem, size = 0x1000, scoped, tag = 'output window, operand 0, single buffered']
    %8 = vsyncpa [#allocation3], 0
    %9 = vsyncpa [#allocation6], 0
    %10 = vsyncpa [#allocation4], 0
    // Predicated region
    $region2: #{tpu_custom_call.1} parent=1 // pred_check
      _
    $region3: #{tpu_custom_call.1} parent=1 // pred_check_branch
      %12 = sbr.rel (0) target = $region5
    $region4: #{tpu_custom_call.1} parent=1 // pred_region
      %14 = vsyncadd [#allocation3], 0
      %s16 = sshll.u32 %s0, 4
      %s17 = int_to_ptr.hbm [resolvable:$true] %s16
      %s18 = sshll.u32 [#allocation2], 4
      %s19 = int_to_ptr.vmem [resolvable:$true] %s18
      %21 = dma.hbm_to_vmem [thread:$0]  %s17, 128, %s19, [#allocation3]
    $region5: #{tpu_custom_call.1} parent=1 // pred_fallthru
      _
    // Predicated region
    $region6: #{tpu_custom_call.1} parent=1 // pred_check
      _
    $region7: #{tpu_custom_call.1} parent=1 // pred_check_branch
      %23 = sbr.rel (0) target = $region9
    $region8: #{tpu_custom_call.1} parent=1 // pred_region
      %25 = vsyncadd [#allocation6], 0
      %s26 = sshll.u32 %s1, 4
      %s27 = int_to_ptr.hbm [resolvable:$true] %s26
      %s28 = sshll.u32 [#allocation5], 4
      %s29 = int_to_ptr.vmem [resolvable:$true] %s28
      %34 = dma.hbm_to_vmem [thread:$0]  %s27, 2048, %s29, [#allocation6], 128, 128, 8
    $region9: #{tpu_custom_call.1} parent=1 // pred_fallthru
      _
    // Predicated region
    $region10: #{tpu_custom_call.1} parent=1 // pred_check
      _
    $region11: #{tpu_custom_call.1} parent=1 // pred_check_branch
      %36 = sbr.rel (0) target = $region13
    $region12: #{tpu_custom_call.1} parent=1 // pred_region
      _
    $region13: #{tpu_custom_call.1} parent=1 // pred_fallthru
      _
    // Predicated region
    $region14: #{tpu_custom_call.1} parent=1 // pred_check
      _
    $region15: #{tpu_custom_call.1} parent=1 // pred_check_branch
      %38 = sbr.rel (0) target = $region17
    $region16: #{tpu_custom_call.1} parent=1 // pred_region
      %40 = dma.done [#allocation3], 128
    $region17: #{tpu_custom_call.1} parent=1 // pred_fallthru
      _
    // Predicated region
    $region18: #{tpu_custom_call.1} parent=1 // pred_check
      _
    $region19: #{tpu_custom_call.1} parent=1 // pred_check_branch
      %42 = sbr.rel (0) target = $region21
    $region20: #{tpu_custom_call.1} parent=1 // pred_region
      %44 = dma.done [#allocation6], 2048
    $region21: #{tpu_custom_call.1} parent=1 // pred_fallthru
      _
    %v45 = vld [vmem:[#allocation2] sm:$0xff]
    %v46 = vld [vmem:[#allocation5] sm:$0xff]
    %v47 = vld [vmem:[#allocation5 + $0x8] sm:$0xff]
    %v48 = vld [vmem:[#allocation5 + $0x10] sm:$0xff]
    %v49 = vld [vmem:[#allocation5 + $0x18] sm:$0xff]
    %v50 = vld [vmem:[#allocation5 + $0x20] sm:$0xff]
    %v51 = vld [vmem:[#allocation5 + $0x28] sm:$0xff]
    %v52 = vld [vmem:[#allocation5 + $0x30] sm:$0xff]
    %v53 = vld [vmem:[#allocation5 + $0x38] sm:$0xff]
    %v54 = vld [vmem:[#allocation5 + $0x40] sm:$0xff]
    %v55 = vld [vmem:[#allocation5 + $0x48] sm:$0xff]
    %v56 = vld [vmem:[#allocation5 + $0x50] sm:$0xff]
    %v57 = vld [vmem:[#allocation5 + $0x58] sm:$0xff]
    %v58 = vld [vmem:[#allocation5 + $0x60] sm:$0xff]
    %v59 = vld [vmem:[#allocation5 + $0x68] sm:$0xff]
    %v60 = vld [vmem:[#allocation5 + $0x70] sm:$0xff]
    %v61 = vld [vmem:[#allocation5 + $0x78] sm:$0xff]
    %v62 = vld [vmem:[%s2] sm:$0x1]
    %v64 = vperm.slane %v62, 0
    %66 = vmatpush.xpose.msra.mxu0 %v61
    %67 = vmatpush.xpose.msra.mxu0 %v60
    %68 = vmatpush.xpose.msra.mxu0 %v59
    %69 = vmatpush.xpose.msra.mxu0 %v58
    %70 = vmatpush.xpose.msra.mxu0 %v57
    %71 = vmatpush.xpose.msra.mxu0 %v56
    %72 = vmatpush.xpose.msra.mxu0 %v55
    %73 = vmatpush.xpose.msra.mxu0 %v54
    %74 = vmatpush.xpose.msra.mxu0 %v53
    %75 = vmatpush.xpose.msra.mxu0 %v52
    %76 = vmatpush.xpose.msra.mxu0 %v51
    %77 = vmatpush.xpose.msra.mxu0 %v50
    %78 = vmatpush.xpose.msra.mxu0 %v49
    %79 = vmatpush.xpose.msra.mxu0 %v48
    %80 = vmatpush.xpose.msra.mxu0 %v47
    %81 = vmatpush.xpose.msra.mxu0 %v46
    %82 = vmatmul.f32.gmra.mxu0 %v45
    %v83 = vpop.f32.mrf.mxu0
    %v84 = vadd.f32 %v64, %v83
    %85 = vdwg.mxu0
    %86 = vst [vmem:[#allocation7] sm:$0xff] %v84
    // Predicated region
    $region22: #{tpu_custom_call.1} parent=1 // pred_check
      _
    $region23: #{tpu_custom_call.1} parent=1 // pred_check_branch
      %88 = sbr.rel (0) target = $region25
    $region24: #{tpu_custom_call.1} parent=1 // pred_region
      %90 = vsyncadd [#allocation4], 0
      %s92 = sshll.u32 [#allocation7], 4
      %s93 = int_to_ptr.vmem [resolvable:$true] %s92
      %s94 = sshll.u32 %s3, 4
      %s95 = int_to_ptr.hbm [resolvable:$true] %s94
      %97 = dma.vmem_to_hbm [thread:$0]  %s93, 128, %s95, [#allocation4]
    $region25: #{tpu_custom_call.1} parent=1 // pred_fallthru
      _
    // Predicated region
    $region26: #{tpu_custom_call.1} parent=1 // pred_check
      _
    $region27: #{tpu_custom_call.1} parent=1 // pred_check_branch
      %99 = sbr.rel (0) target = $region29
    $region28: #{tpu_custom_call.1} parent=1 // pred_region
      %101 = dma.done [#allocation4], 128
    $region29: #{tpu_custom_call.1} parent=1 // pred_fallthru
      _
    %102 = vsyncpa [#allocation3], 1
    %103 = vsyncpa [#allocation6], 1
    %104 = vsyncpa [#allocation4], 1

</llo_original>
